<compile_context>
chip_gen: v5e
topology: v5e:2x2
jax: 0.10.0
libtpu: 0.0.40
codegen_flags: <defaults>
</compile_context>

<pallas_src>
import functools

import jax
import jax.numpy as jnp
from jax import lax
from jax.experimental import pallas as pl
from jax.experimental.pallas import tpu as pltpu

EPS = 1e-5


def _fused_block_kernel(N, H, W, C0, C1, K,
                        x_ref, mask_ref, avg0_ref, avg1_ref, pv_ref,
                        wr1_ref, wr2_ref, w3_ref, o_ref, pad_ref):
    """Fused ReLU -> BatchNorm -> Conv (x3) on a row-stacked (L, W*C) slab."""
    f32 = jnp.float32
    p = (K - 1) // 2
    Hp = H + 2 * p
    L = N * Hp
    wc0, wc1 = W * C0, W * C1
    mask = mask_ref[...]                               # (L, 1): 1.0 on real image rows

    # Zero the stack-level halo rows of the shared conv scratch once; per-image
    # halo / inter-image junk rows inside [p, L+p) are kept zero via the mask.
    pad_ref[0:p, :] = jnp.zeros((p, wc1), f32)
    pad_ref[L + p:L + 2 * p, :] = jnp.zeros((p, wc1), f32)

    def relu_bn(y, avg_ref, gamma_t, beta_t):
        """ReLU + training-mode BatchNorm (batch stats of the ReLU output),
        masked to zero on halo/junk rows so the result doubles as the
        zero-padded conv input."""
        a = jnp.maximum(y, 0.0)
        am = a * mask
        s1 = jnp.sum(am, axis=0, keepdims=True)        # (1, wc) per-(w,c) sums
        s2 = jnp.sum(am * a, axis=0, keepdims=True)    # mask * a^2
        A = avg_ref[...]                               # (wc, wc) chan-avg + lane bcast
        # NOTE: kept as two M=1 dots (not a stacked (2,wc) dot) for lowering
        # robustness of sublane concatenation; the dots share the same RHS.
        mean_t = jnp.dot(s1, A, preferred_element_type=f32)
        ex2_t = jnp.dot(s2, A, preferred_element_type=f32)
        var_t = jnp.maximum(ex2_t - mean_t * mean_t, 0.0)   # guard f32 cancellation
        scale_t = gamma_t * lax.rsqrt(var_t + EPS)
        shift_t = beta_t - mean_t * scale_t
        return (a * scale_t + shift_t) * mask

    def conv_rows(xn, wcin, wr_ref, bias_t):
        """KxK 'same' conv over the whole image stack: one aligned store of the
        zero-haloed input, then K row-shifted MXU matmuls against the kw-folded
        offset-block-diagonal weights.  Bias seeds the accumulator."""
        pad_ref[p:L + p, 0:wcin] = xn
        acc = jnp.dot(pad_ref[0:L, 0:wcin], wr_ref[0],
                      preferred_element_type=f32) + bias_t
        for kh in range(1, K):
            acc = acc + jnp.dot(pad_ref[kh:kh + L, 0:wcin], wr_ref[kh],
                                preferred_element_type=f32)
        return acc                                     # (L, wcout); junk rows harmless

    x = x_ref[...]                                     # (L, wc0)

    # OneConv 1: ReLU -> BN(C0) -> Conv KxK (C0 -> C1)
    y = conv_rows(relu_bn(x, avg0_ref, pv_ref[0:1, 0:wc0], pv_ref[1:2, 0:wc0]),
                  wc0, wr1_ref, pv_ref[2:3, 0:wc1])
    # OneConv 2: ReLU -> BN(C1) -> Conv KxK (C1 -> C1)
    y = conv_rows(relu_bn(y, avg1_ref, pv_ref[3:4, 0:wc1], pv_ref[4:5, 0:wc1]),
                  wc1, wr2_ref, pv_ref[5:6, 0:wc1])
    # OneConv 3: ReLU -> BN(C1) -> Conv 1x1: one full-stack matmul, dense store.
    n3 = relu_bn(y, avg1_ref, pv_ref[6:7, 0:wc1], pv_ref[7:8, 0:wc1])
    o_ref[...] = (jnp.dot(n3, w3_ref[...], preferred_element_type=f32)
                  + pv_ref[8:9, 0:wc1]).astype(o_ref.dtype)


def prepare_params(params, batch, height, width):
    """One-time preparation, hoisted out of the per-call forward path:
    fold each conv into per-kh-row offset-block-diagonal matrices, lane-tile
    gamma/beta/bias into one (9, lanes) pack, and build the channel-averaging
    matrices plus the valid-row mask for the stacked layout."""
    (g1, b1, w1, bi1), (g2, b2, w2, bi2), (g3, b3, w3, bi3) = params
    K = w1.shape[0]
    C0, C1 = w1.shape[2], w1.shape[3]
    p = (K - 1) // 2
    W = width
    Hp = height + 2 * p
    L = batch * Hp
    lanes = W * max(C0, C1)
    count = float(batch * height * W)

    def fold_rows(w):
        # Wrow[kh][j*cin+ci, j2*cout+co] = w[kh, j - j2 + pk, ci, co], 0 if |j-j2|>pk
        k, cin, cout = w.shape[0], w.shape[2], w.shape[3]
        pk = (k - 1) // 2
        j = jnp.arange(W)[:, None]                     # input column group
        j2 = jnp.arange(W)[None, :]                    # output column group
        kw = j - j2 + pk                               # horizontal tap per (j, j2)
        valid = ((kw >= 0) & (kw < k)).astype(jnp.float32)
        sel = w.astype(jnp.float32)[:, jnp.clip(kw, 0, k - 1), :, :]  # (k,W,W,cin,cout)
        sel = sel * valid[None, :, :, None, None]
        sel = jnp.transpose(sel, (0, 1, 3, 2, 4))      # (k, j, cin, j2, cout)
        return sel.reshape(k, W * cin, W * cout)

    def lane_tile(v):
        t = jnp.tile(v.astype(jnp.float32), W)
        return jnp.pad(t, (0, lanes - t.shape[0]))

    def chan_avg(C):
        wc = W * C
        r = jnp.arange(wc)[:, None] % C
        c = jnp.arange(wc)[None, :] % C
        return (r == c).astype(jnp.float32) * (1.0 / count)

    rows = jnp.arange(L) % Hp
    mask = ((rows >= p) & (rows < p + height)).astype(jnp.float32)[:, None]

    pv = jnp.stack([lane_tile(g1), lane_tile(b1), lane_tile(bi1),
                    lane_tile(g2), lane_tile(b2), lane_tile(bi2),
                    lane_tile(g3), lane_tile(b3), lane_tile(bi3)], axis=0)

    return {"wr1": fold_rows(w1), "wr2": fold_rows(w2), "w3": fold_rows(w3)[0],
            "pv": pv, "a0": chan_avg(C0), "a1": chan_avg(C1), "mask": mask}


@jax.jit
def no_skip_conv_block(x_nchw, prep):
    """Forward pass of NoSkipConvBlock.  x_nchw: (N, C, H, W).
    prep: output of prepare_params (built once, reused across calls)."""
    N, C0, H, W = x_nchw.shape
    wr1, wr2, w3 = prep["wr1"], prep["wr2"], prep["w3"]
    K = wr1.shape[0]
    C1 = wr1.shape[2] // W
    p = (K - 1) // 2
    Hp = H + 2 * p
    L = N * Hp

    # NCHW -> folded channels-last (N, H, W*C0) -> row-padded image stack (L, W*C0).
    x = jnp.transpose(x_nchw, (0, 2, 3, 1)).astype(jnp.float32).reshape(N, H, W * C0)
    x = jnp.pad(x, ((0, 0), (p, p), (0, 0))).reshape(L, W * C0)

    kernel = functools.partial(_fused_block_kernel, N, H, W, C0, C1, K)
    vmem = pl.BlockSpec(memory_space=pltpu.MemorySpace.VMEM)
    out = pl.pallas_call(
        kernel,
        out_shape=jax.ShapeDtypeStruct((L, W * C1), jnp.float32),
        in_specs=[vmem] * 8,
        out_specs=vmem,
        scratch_shapes=[pltpu.VMEM((L + 2 * p, W * C1), jnp.float32)],
        # Explicit VMEM budget: well under v7x's 64 MiB physical / 32 MiB default.
        compiler_params=pltpu.CompilerParams(vmem_limit_bytes=32 * 1024 * 1024),
    )(x, prep["mask"], prep["a0"], prep["a1"], prep["pv"], wr1, wr2, w3)

    # Drop per-image halo rows and unfold (N, H, W*C1) -> NCHW.
    out = out.reshape(N, Hp, W, C1)[:, p:p + H]
    return jnp.transpose(out, (0, 3, 1, 2))


def no_skip_conv_block_ref(x_nchw, params):
    """Pure-JAX reference (for correctness check)."""
    y = jnp.transpose(x_nchw, (0, 2, 3, 1))
    for gamma, beta, w, b in params:
        a = jax.nn.relu(y)
        mean = jnp.mean(a, axis=(0, 1, 2))
        var = jnp.var(a, axis=(0, 1, 2))
        normed = (a - mean) / jnp.sqrt(var + EPS) * gamma + beta
        y = lax.conv_general_dilated(
            normed, w, window_strides=(1, 1), padding="SAME",
            dimension_numbers=("NHWC", "HWIO", "NHWC")) + b
    return jnp.transpose(y, (0, 3, 1, 2))


def init_params(key, filter_in=4, filter_num=8, filter_size=3):
    """Deterministic synthetic parameters matching NoSkipConvBlock.__init__."""
    ks = jax.random.split(key, 9)
    params = []
    layer_cfg = [
        (filter_in, filter_num, filter_size),   # conv1
        (filter_num, filter_num, filter_size),  # conv2
        (filter_num, filter_num, 1),            # conv3 (1x1)
    ]
    for i, (cin, cout, k) in enumerate(layer_cfg):
        kw_, kb_, kg_ = ks[3 * i], ks[3 * i + 1], ks[3 * i + 2]
        w = 0.1 * jax.random.normal(kw_, (k, k, cin, cout), jnp.float32)  # HWIO
        b = 0.1 * jax.random.normal(kb_, (cout,), jnp.float32)
        gamma = 1.0 + 0.1 * jax.random.normal(kg_, (cin,), jnp.float32)
        beta = 0.05 * jnp.arange(cin, dtype=jnp.float32)
        params.append((gamma, beta, w, b))
    return params


if __name__ == "__main__":
    key = jax.random.PRNGKey(0)
    kx, kp = jax.random.split(key)
    x = jax.random.normal(kx, (2, 4, 16, 16), jnp.float32)  # NCHW like PyTorch
    params = init_params(kp, filter_in=4, filter_num=8, filter_size=3)

    prep = prepare_params(params, batch=2, height=16, width=16)  # one-time prep
    out = jax.block_until_ready(no_skip_conv_block(x, prep))
    ref = jax.block_until_ready(no_skip_conv_block_ref(x, params))

    assert out.shape == (2, 8, 16, 16), out.shape
    err = float(jnp.max(jnp.abs(out - ref)))
    assert jnp.allclose(out, ref, atol=2e-4, rtol=2e-4), err
    print("KERNEL_OK")
</pallas_src>

<mosaic_0001>
module attributes {stable_mosaic.version = 11 : i64} {
  func.func @_fused_block_kernel(%arg0: memref<36x64xf32, #tpu.memory_space<vmem>>, %arg1: memref<36x1xf32, #tpu.memory_space<vmem>>, %arg2: memref<64x64xf32, #tpu.memory_space<vmem>>, %arg3: memref<128x128xf32, #tpu.memory_space<vmem>>, %arg4: memref<9x128xf32, #tpu.memory_space<vmem>>, %arg5: memref<3x64x128xf32, #tpu.memory_space<vmem>>, %arg6: memref<3x128x128xf32, #tpu.memory_space<vmem>>, %arg7: memref<128x128xf32, #tpu.memory_space<vmem>>, %arg8: memref<36x128xf32, #tpu.memory_space<vmem>>, %arg9: memref<38x128xf32, #tpu.memory_space<vmem>>) attributes {dimension_semantics = [], scalar_prefetch = 0 : i64, scratch_operands = 1 : i64, tpu.core_type = #tpu.core_type<tc>} {
    %c0 = arith.constant 0 : index
    %c0_0 = arith.constant 0 : index
    %0 = vector.load %arg1[%c0, %c0_0] : memref<36x1xf32, #tpu.memory_space<vmem>>, vector<36x1xf32>
    %cst = arith.constant 0.000000e+00 : f32
    %1 = vector.broadcast %cst : f32 to vector<1x128xf32>
    %c0_1 = arith.constant 0 : index
    %c0_2 = arith.constant 0 : index
    %2 = vector.load %arg9[%c0_1, %c0_2] : memref<38x128xf32, #tpu.memory_space<vmem>>, vector<1x128xf32>
    tpu.vector_store %arg9[%c0_1, %c0_2], %1 {strides = array<i32>} : memref<38x128xf32, #tpu.memory_space<vmem>>, vector<1x128xf32>,
    %cst_3 = arith.constant 0.000000e+00 : f32
    %3 = vector.broadcast %cst_3 : f32 to vector<1x128xf32>
    %c37 = arith.constant 37 : index
    %c0_4 = arith.constant 0 : index
    %4 = vector.load %arg9[%c37, %c0_4] : memref<38x128xf32, #tpu.memory_space<vmem>>, vector<1x128xf32>
    tpu.vector_store %arg9[%c37, %c0_4], %3 {strides = array<i32>} : memref<38x128xf32, #tpu.memory_space<vmem>>, vector<1x128xf32>,
    %c0_5 = arith.constant 0 : index
    %c0_6 = arith.constant 0 : index
    %5 = vector.load %arg0[%c0_5, %c0_6] : memref<36x64xf32, #tpu.memory_space<vmem>>, vector<36x64xf32>
    %c0_7 = arith.constant 0 : index
    %c0_8 = arith.constant 0 : index
    %6 = vector.load %arg4[%c0_7, %c0_8] : memref<9x128xf32, #tpu.memory_space<vmem>>, vector<1x64xf32>
    %c1 = arith.constant 1 : index
    %c0_9 = arith.constant 0 : index
    %7 = vector.load %arg4[%c1, %c0_9] : memref<9x128xf32, #tpu.memory_space<vmem>>, vector<1x64xf32>
    %cst_10 = arith.constant 0.000000e+00 : f32
    %8 = vector.broadcast %cst_10 : f32 to vector<36x64xf32>
    %9 = arith.maximumf %5, %8 : vector<36x64xf32>
    %10 = vector.broadcast %0 : vector<36x1xf32> to vector<36x64xf32>
    %11 = arith.mulf %9, %10 : vector<36x64xf32>
    %cst_11 = arith.constant dense<0.000000e+00> : vector<64xf32>
    %12 = vector.multi_reduction <add>, %11, %cst_11 [0] : vector<36x64xf32> to vector<64xf32>
    %13 = vector.shape_cast %12 : vector<64xf32> to vector<1x64xf32>
    %14 = arith.mulf %11, %9 : vector<36x64xf32>
    %cst_12 = arith.constant dense<0.000000e+00> : vector<64xf32>
    %15 = vector.multi_reduction <add>, %14, %cst_12 [0] : vector<36x64xf32> to vector<64xf32>
    %16 = vector.shape_cast %15 : vector<64xf32> to vector<1x64xf32>
    %c0_13 = arith.constant 0 : index
    %c0_14 = arith.constant 0 : index
    %17 = vector.load %arg2[%c0_13, %c0_14] : memref<64x64xf32, #tpu.memory_space<vmem>>, vector<64x64xf32>
    %cst_15 = arith.constant dense<0.000000e+00> : vector<1x64xf32>
    %18 = tpu.matmul %13, %17, %cst_15 {dimension_numbers = #tpu.dot_dimension_numbers<[1], [0], [0], [1], [0, 0, 1, 1], [], []>} : vector<1x64xf32>, vector<64x64xf32>, vector<1x64xf32> -> vector<1x64xf32>
    %cst_16 = arith.constant dense<0.000000e+00> : vector<1x64xf32>
    %19 = tpu.matmul %16, %17, %cst_16 {dimension_numbers = #tpu.dot_dimension_numbers<[1], [0], [0], [1], [0, 0, 1, 1], [], []>} : vector<1x64xf32>, vector<64x64xf32>, vector<1x64xf32> -> vector<1x64xf32>
    %20 = arith.mulf %18, %18 : vector<1x64xf32>
    %21 = arith.subf %19, %20 : vector<1x64xf32>
    %cst_17 = arith.constant 0.000000e+00 : f32
    %22 = vector.broadcast %cst_17 : f32 to vector<1x64xf32>
    %23 = arith.maximumf %21, %22 : vector<1x64xf32>
    %cst_18 = arith.constant 9.99999974E-6 : f32
    %24 = vector.broadcast %cst_18 : f32 to vector<1x64xf32>
    %25 = arith.addf %23, %24 : vector<1x64xf32>
    %26 = math.rsqrt %25 : vector<1x64xf32>
    %27 = arith.mulf %6, %26 : vector<1x64xf32>
    %28 = arith.mulf %18, %27 : vector<1x64xf32>
    %29 = arith.subf %7, %28 : vector<1x64xf32>
    %30 = vector.broadcast %27 : vector<1x64xf32> to vector<36x64xf32>
    %31 = arith.mulf %9, %30 : vector<36x64xf32>
    %32 = vector.broadcast %29 : vector<1x64xf32> to vector<36x64xf32>
    %33 = arith.addf %31, %32 : vector<36x64xf32>
    %34 = vector.broadcast %0 : vector<36x1xf32> to vector<36x64xf32>
    %35 = arith.mulf %33, %34 : vector<36x64xf32>
    %c2 = arith.constant 2 : index
    %c0_19 = arith.constant 0 : index
    %36 = vector.load %arg4[%c2, %c0_19] : memref<9x128xf32, #tpu.memory_space<vmem>>, vector<1x128xf32>
    %c1_20 = arith.constant 1 : index
    %c0_21 = arith.constant 0 : index
    %37 = vector.load %arg9[%c1_20, %c0_21] : memref<38x128xf32, #tpu.memory_space<vmem>>, vector<36x64xf32>
    tpu.vector_store %arg9[%c1_20, %c0_21], %35 {strides = array<i32>} : memref<38x128xf32, #tpu.memory_space<vmem>>, vector<36x64xf32>,
    %c0_22 = arith.constant 0 : index
    %c0_23 = arith.constant 0 : index
    %38 = vector.load %arg9[%c0_22, %c0_23] : memref<38x128xf32, #tpu.memory_space<vmem>>, vector<36x64xf32>
    %c0_24 = arith.constant 0 : index
    %c0_25 = arith.constant 0 : index
    %c0_26 = arith.constant 0 : index
    %39 = vector.load %arg5[%c0_24, %c0_25, %c0_26] : memref<3x64x128xf32, #tpu.memory_space<vmem>>, vector<1x64x128xf32>
    %40 = vector.shape_cast %39 : vector<1x64x128xf32> to vector<64x128xf32>
    %cst_27 = arith.constant dense<0.000000e+00> : vector<36x128xf32>
    %41 = tpu.matmul %38, %40, %cst_27 {dimension_numbers = #tpu.dot_dimension_numbers<[1], [0], [0], [1], [0, 0, 1, 1], [], []>} : vector<36x64xf32>, vector<64x128xf32>, vector<36x128xf32> -> vector<36x128xf32>
    %42 = vector.broadcast %36 : vector<1x128xf32> to vector<36x128xf32>
    %43 = arith.addf %41, %42 : vector<36x128xf32>
    %c1_28 = arith.constant 1 : index
    %c0_29 = arith.constant 0 : index
    %44 = vector.load %arg9[%c1_28, %c0_29] : memref<38x128xf32, #tpu.memory_space<vmem>>, vector<36x64xf32>
    %c1_30 = arith.constant 1 : index
    %c0_31 = arith.constant 0 : index
    %c0_32 = arith.constant 0 : index
    %45 = vector.load %arg5[%c1_30, %c0_31, %c0_32] : memref<3x64x128xf32, #tpu.memory_space<vmem>>, vector<1x64x128xf32>
    %46 = vector.shape_cast %45 : vector<1x64x128xf32> to vector<64x128xf32>
    %cst_33 = arith.constant dense<0.000000e+00> : vector<36x128xf32>
    %47 = tpu.matmul %44, %46, %cst_33 {dimension_numbers = #tpu.dot_dimension_numbers<[1], [0], [0], [1], [0, 0, 1, 1], [], []>} : vector<36x64xf32>, vector<64x128xf32>, vector<36x128xf32> -> vector<36x128xf32>
    %48 = arith.addf %43, %47 : vector<36x128xf32>
    %c2_34 = arith.constant 2 : index
    %c0_35 = arith.constant 0 : index
    %49 = vector.load %arg9[%c2_34, %c0_35] : memref<38x128xf32, #tpu.memory_space<vmem>>, vector<36x64xf32>
    %c2_36 = arith.constant 2 : index
    %c0_37 = arith.constant 0 : index
    %c0_38 = arith.constant 0 : index
    %50 = vector.load %arg5[%c2_36, %c0_37, %c0_38] : memref<3x64x128xf32, #tpu.memory_space<vmem>>, vector<1x64x128xf32>
    %51 = vector.shape_cast %50 : vector<1x64x128xf32> to vector<64x128xf32>
    %cst_39 = arith.constant dense<0.000000e+00> : vector<36x128xf32>
    %52 = tpu.matmul %49, %51, %cst_39 {dimension_numbers = #tpu.dot_dimension_numbers<[1], [0], [0], [1], [0, 0, 1, 1], [], []>} : vector<36x64xf32>, vector<64x128xf32>, vector<36x128xf32> -> vector<36x128xf32>
    %53 = arith.addf %48, %52 : vector<36x128xf32>
    %c3 = arith.constant 3 : index
    %c0_40 = arith.constant 0 : index
    %54 = vector.load %arg4[%c3, %c0_40] : memref<9x128xf32, #tpu.memory_space<vmem>>, vector<1x128xf32>
    %c4 = arith.constant 4 : index
    %c0_41 = arith.constant 0 : index
    %55 = vector.load %arg4[%c4, %c0_41] : memref<9x128xf32, #tpu.memory_space<vmem>>, vector<1x128xf32>
    %cst_42 = arith.constant 0.000000e+00 : f32
    %56 = vector.broadcast %cst_42 : f32 to vector<36x128xf32>
    %57 = arith.maximumf %53, %56 : vector<36x128xf32>
    %58 = vector.broadcast %0 : vector<36x1xf32> to vector<36x128xf32>
    %59 = arith.mulf %57, %58 : vector<36x128xf32>
    %cst_43 = arith.constant dense<0.000000e+00> : vector<128xf32>
    %60 = vector.multi_reduction <add>, %59, %cst_43 [0] : vector<36x128xf32> to vector<128xf32>
    %61 = vector.shape_cast %60 : vector<128xf32> to vector<1x128xf32>
    %62 = arith.mulf %59, %57 : vector<36x128xf32>
    %cst_44 = arith.constant dense<0.000000e+00> : vector<128xf32>
    %63 = vector.multi_reduction <add>, %62, %cst_44 [0] : vector<36x128xf32> to vector<128xf32>
    %64 = vector.shape_cast %63 : vector<128xf32> to vector<1x128xf32>
    %c0_45 = arith.constant 0 : index
    %c0_46 = arith.constant 0 : index
    %65 = vector.load %arg3[%c0_45, %c0_46] : memref<128x128xf32, #tpu.memory_space<vmem>>, vector<128x128xf32>
    %cst_47 = arith.constant dense<0.000000e+00> : vector<1x128xf32>
    %66 = tpu.matmul %61, %65, %cst_47 {dimension_numbers = #tpu.dot_dimension_numbers<[1], [0], [0], [1], [0, 0, 1, 1], [], []>} : vector<1x128xf32>, vector<128x128xf32>, vector<1x128xf32> -> vector<1x128xf32>
    %cst_48 = arith.constant dense<0.000000e+00> : vector<1x128xf32>
    %67 = tpu.matmul %64, %65, %cst_48 {dimension_numbers = #tpu.dot_dimension_numbers<[1], [0], [0], [1], [0, 0, 1, 1], [], []>} : vector<1x128xf32>, vector<128x128xf32>, vector<1x128xf32> -> vector<1x128xf32>
    %68 = arith.mulf %66, %66 : vector<1x128xf32>
    %69 = arith.subf %67, %68 : vector<1x128xf32>
    %cst_49 = arith.constant 0.000000e+00 : f32
    %70 = vector.broadcast %cst_49 : f32 to vector<1x128xf32>
    %71 = arith.maximumf %69, %70 : vector<1x128xf32>
    %cst_50 = arith.constant 9.99999974E-6 : f32
    %72 = vector.broadcast %cst_50 : f32 to vector<1x128xf32>
    %73 = arith.addf %71, %72 : vector<1x128xf32>
    %74 = math.rsqrt %73 : vector<1x128xf32>
    %75 = arith.mulf %54, %74 : vector<1x128xf32>
    %76 = arith.mulf %66, %75 : vector<1x128xf32>
    %77 = arith.subf %55, %76 : vector<1x128xf32>
    %78 = vector.broadcast %75 : vector<1x128xf32> to vector<36x128xf32>
    %79 = arith.mulf %57, %78 : vector<36x128xf32>
    %80 = vector.broadcast %77 : vector<1x128xf32> to vector<36x128xf32>
    %81 = arith.addf %79, %80 : vector<36x128xf32>
    %82 = vector.broadcast %0 : vector<36x1xf32> to vector<36x128xf32>
    %83 = arith.mulf %81, %82 : vector<36x128xf32>
    %c5 = arith.constant 5 : index
    %c0_51 = arith.constant 0 : index
    %84 = vector.load %arg4[%c5, %c0_51] : memref<9x128xf32, #tpu.memory_space<vmem>>, vector<1x128xf32>
    %c1_52 = arith.constant 1 : index
    %c0_53 = arith.constant 0 : index
    %85 = vector.load %arg9[%c1_52, %c0_53] : memref<38x128xf32, #tpu.memory_space<vmem>>, vector<36x128xf32>
    tpu.vector_store %arg9[%c1_52, %c0_53], %83 {strides = array<i32>} : memref<38x128xf32, #tpu.memory_space<vmem>>, vector<36x128xf32>,
    %c0_54 = arith.constant 0 : index
    %c0_55 = arith.constant 0 : index
    %86 = vector.load %arg9[%c0_54, %c0_55] : memref<38x128xf32, #tpu.memory_space<vmem>>, vector<36x128xf32>
    %c0_56 = arith.constant 0 : index
    %c0_57 = arith.constant 0 : index
    %c0_58 = arith.constant 0 : index
    %87 = vector.load %arg6[%c0_56, %c0_57, %c0_58] : memref<3x128x128xf32, #tpu.memory_space<vmem>>, vector<1x128x128xf32>
    %88 = vector.shape_cast %87 : vector<1x128x128xf32> to vector<128x128xf32>
    %cst_59 = arith.constant dense<0.000000e+00> : vector<36x128xf32>
    %89 = tpu.matmul %86, %88, %cst_59 {dimension_numbers = #tpu.dot_dimension_numbers<[1], [0], [0], [1], [0, 0, 1, 1], [], []>} : vector<36x128xf32>, vector<128x128xf32>, vector<36x128xf32> -> vector<36x128xf32>
    %90 = vector.broadcast %84 : vector<1x128xf32> to vector<36x128xf32>
    %91 = arith.addf %89, %90 : vector<36x128xf32>
    %c1_60 = arith.constant 1 : index
    %c0_61 = arith.constant 0 : index
    %92 = vector.load %arg9[%c1_60, %c0_61] : memref<38x128xf32, #tpu.memory_space<vmem>>, vector<36x128xf32>
    %c1_62 = arith.constant 1 : index
    %c0_63 = arith.constant 0 : index
    %c0_64 = arith.constant 0 : index
    %93 = vector.load %arg6[%c1_62, %c0_63, %c0_64] : memref<3x128x128xf32, #tpu.memory_space<vmem>>, vector<1x128x128xf32>
    %94 = vector.shape_cast %93 : vector<1x128x128xf32> to vector<128x128xf32>
    %cst_65 = arith.constant dense<0.000000e+00> : vector<36x128xf32>
    %95 = tpu.matmul %92, %94, %cst_65 {dimension_numbers = #tpu.dot_dimension_numbers<[1], [0], [0], [1], [0, 0, 1, 1], [], []>} : vector<36x128xf32>, vector<128x128xf32>, vector<36x128xf32> -> vector<36x128xf32>
    %96 = arith.addf %91, %95 : vector<36x128xf32>
    %c2_66 = arith.constant 2 : index
    %c0_67 = arith.constant 0 : index
    %97 = vector.load %arg9[%c2_66, %c0_67] : memref<38x128xf32, #tpu.memory_space<vmem>>, vector<36x128xf32>
    %c2_68 = arith.constant 2 : index
    %c0_69 = arith.constant 0 : index
    %c0_70 = arith.constant 0 : index
    %98 = vector.load %arg6[%c2_68, %c0_69, %c0_70] : memref<3x128x128xf32, #tpu.memory_space<vmem>>, vector<1x128x128xf32>
    %99 = vector.shape_cast %98 : vector<1x128x128xf32> to vector<128x128xf32>
    %cst_71 = arith.constant dense<0.000000e+00> : vector<36x128xf32>
    %100 = tpu.matmul %97, %99, %cst_71 {dimension_numbers = #tpu.dot_dimension_numbers<[1], [0], [0], [1], [0, 0, 1, 1], [], []>} : vector<36x128xf32>, vector<128x128xf32>, vector<36x128xf32> -> vector<36x128xf32>
    %101 = arith.addf %96, %100 : vector<36x128xf32>
    %c6 = arith.constant 6 : index
    %c0_72 = arith.constant 0 : index
    %102 = vector.load %arg4[%c6, %c0_72] : memref<9x128xf32, #tpu.memory_space<vmem>>, vector<1x128xf32>
    %c7 = arith.constant 7 : index
    %c0_73 = arith.constant 0 : index
    %103 = vector.load %arg4[%c7, %c0_73] : memref<9x128xf32, #tpu.memory_space<vmem>>, vector<1x128xf32>
    %cst_74 = arith.constant 0.000000e+00 : f32
    %104 = vector.broadcast %cst_74 : f32 to vector<36x128xf32>
    %105 = arith.maximumf %101, %104 : vector<36x128xf32>
    %106 = vector.broadcast %0 : vector<36x1xf32> to vector<36x128xf32>
    %107 = arith.mulf %105, %106 : vector<36x128xf32>
    %cst_75 = arith.constant dense<0.000000e+00> : vector<128xf32>
    %108 = vector.multi_reduction <add>, %107, %cst_75 [0] : vector<36x128xf32> to vector<128xf32>
    %109 = vector.shape_cast %108 : vector<128xf32> to vector<1x128xf32>
    %110 = arith.mulf %107, %105 : vector<36x128xf32>
    %cst_76 = arith.constant dense<0.000000e+00> : vector<128xf32>
    %111 = vector.multi_reduction <add>, %110, %cst_76 [0] : vector<36x128xf32> to vector<128xf32>
    %112 = vector.shape_cast %111 : vector<128xf32> to vector<1x128xf32>
    %c0_77 = arith.constant 0 : index
    %c0_78 = arith.constant 0 : index
    %113 = vector.load %arg3[%c0_77, %c0_78] : memref<128x128xf32, #tpu.memory_space<vmem>>, vector<128x128xf32>
    %cst_79 = arith.constant dense<0.000000e+00> : vector<1x128xf32>
    %114 = tpu.matmul %109, %113, %cst_79 {dimension_numbers = #tpu.dot_dimension_numbers<[1], [0], [0], [1], [0, 0, 1, 1], [], []>} : vector<1x128xf32>, vector<128x128xf32>, vector<1x128xf32> -> vector<1x128xf32>
    %cst_80 = arith.constant dense<0.000000e+00> : vector<1x128xf32>
    %115 = tpu.matmul %112, %113, %cst_80 {dimension_numbers = #tpu.dot_dimension_numbers<[1], [0], [0], [1], [0, 0, 1, 1], [], []>} : vector<1x128xf32>, vector<128x128xf32>, vector<1x128xf32> -> vector<1x128xf32>
    %116 = arith.mulf %114, %114 : vector<1x128xf32>
    %117 = arith.subf %115, %116 : vector<1x128xf32>
    %cst_81 = arith.constant 0.000000e+00 : f32
    %118 = vector.broadcast %cst_81 : f32 to vector<1x128xf32>
    %119 = arith.maximumf %117, %118 : vector<1x128xf32>
    %cst_82 = arith.constant 9.99999974E-6 : f32
    %120 = vector.broadcast %cst_82 : f32 to vector<1x128xf32>
    %121 = arith.addf %119, %120 : vector<1x128xf32>
    %122 = math.rsqrt %121 : vector<1x128xf32>
    %123 = arith.mulf %102, %122 : vector<1x128xf32>
    %124 = arith.mulf %114, %123 : vector<1x128xf32>
    %125 = arith.subf %103, %124 : vector<1x128xf32>
    %126 = vector.broadcast %123 : vector<1x128xf32> to vector<36x128xf32>
    %127 = arith.mulf %105, %126 : vector<36x128xf32>
    %128 = vector.broadcast %125 : vector<1x128xf32> to vector<36x128xf32>
    %129 = arith.addf %127, %128 : vector<36x128xf32>
    %130 = vector.broadcast %0 : vector<36x1xf32> to vector<36x128xf32>
    %131 = arith.mulf %129, %130 : vector<36x128xf32>
    %c0_83 = arith.constant 0 : index
    %c0_84 = arith.constant 0 : index
    %132 = vector.load %arg7[%c0_83, %c0_84] : memref<128x128xf32, #tpu.memory_space<vmem>>, vector<128x128xf32>
    %cst_85 = arith.constant dense<0.000000e+00> : vector<36x128xf32>
    %133 = tpu.matmul %131, %132, %cst_85 {dimension_numbers = #tpu.dot_dimension_numbers<[1], [0], [0], [1], [0, 0, 1, 1], [], []>} : vector<36x128xf32>, vector<128x128xf32>, vector<36x128xf32> -> vector<36x128xf32>
    %c8 = arith.constant 8 : index
    %c0_86 = arith.constant 0 : index
    %134 = vector.load %arg4[%c8, %c0_86] : memref<9x128xf32, #tpu.memory_space<vmem>>, vector<1x128xf32>
    %135 = vector.broadcast %134 : vector<1x128xf32> to vector<36x128xf32>
    %136 = arith.addf %133, %135 : vector<36x128xf32>
    %c0_87 = arith.constant 0 : index
    %c0_88 = arith.constant 0 : index
    %137 = vector.load %arg8[%c0_87, %c0_88] : memref<36x128xf32, #tpu.memory_space<vmem>>, vector<36x128xf32>
    tpu.vector_store %arg8[%c0_87, %c0_88], %136 {strides = array<i32>} : memref<36x128xf32, #tpu.memory_space<vmem>>, vector<36x128xf32>,
    return
  }
}

</mosaic_0001>

<llo_original>
// kernel: no_skip_conv_block.1
$region0: #{no_skip_conv_block.1}
  #allocation0 [shape = 'u32[]', space=smem, size = 0x4, offset = 0x4, fixed_abs, tag = 'smem constant byte address 0x4 - core index']
  #allocation1 [shape = 'u32[72,128]{1,0:T(1,128)}', space=vmem, size = 0x9000, scoped, tag = 'internal scratch']
  #allocation2 [shape = 'f32[38,128]{1,0:T(8,128)}', space=vmem, size = 0x5000, scoped, tag = 'scratch operand']
  %s0 = inlined_call_operand.vmem [shape: f32[36,64], index: 0, kind: input, shape index: {}]
  %s1 = inlined_call_operand.vmem [shape: f32[36,1], index: 1, kind: input, shape index: {}]
  %s2 = inlined_call_operand.hbm [shape: f32[64,64], index: 2, kind: input, shape index: {}]
  %s3 = inlined_call_operand.hbm [shape: f32[128,128], index: 3, kind: input, shape index: {}]
  %s4 = inlined_call_operand.vmem [shape: f32[9,128], index: 4, kind: input, shape index: {}]
  %s5 = inlined_call_operand.vmem [shape: f32[3,64,128], index: 5, kind: input, shape index: {}]
  %s6 = inlined_call_operand.vmem [shape: f32[3,128,128], index: 6, kind: input, shape index: {}]
  %s7 = inlined_call_operand.hbm [shape: f32[128,128], index: 7, kind: input, shape index: {}]
  %s8 = inlined_call_operand.vmem [shape: f32[36,128], index: 8, kind: output, shape index: {}]
  %s9 = sld [smem:[#allocation0]]
  $region54: #{no_skip_conv_block.1} parent=0
    _
  %s11 = ssub.s32 1, %s9
  %s12 = scalar_select 0, %s11, %s9
  $region1: #{no_skip_conv_block.1} parent=0
    #allocation3 [shape = 'u8[32768]{0}', space=vmem, size = 0x8000, scoped, tag = 'input window, operand 2, single buffered']
    #allocation4 [shape = 's32[1]{0}', space=sflag, size = 0x4, scoped, tag = 'scoped memory for no_skip_conv_block.1']
    #allocation5 [shape = 'u8[65536]{0}', space=vmem, size = 0x10000, scoped, tag = 'input window, operand 3, single buffered']
    #allocation6 [shape = 's32[1]{0}', space=sflag, size = 0x4, scoped, tag = 'scoped memory for no_skip_conv_block.1']
    #allocation7 [shape = 'u8[65536]{0}', space=vmem, size = 0x10000, scoped, tag = 'input window, operand 7, single buffered']
    %13 = vsyncpa [#allocation4], 0
    %14 = vsyncpa [#allocation6], 0
    // Predicated region
    $region2: #{no_skip_conv_block.1} parent=1 // pred_check
      _
    $region3: #{no_skip_conv_block.1} parent=1 // pred_check_branch
      %16 = sbr.rel (0) target = $region5
    $region4: #{no_skip_conv_block.1} parent=1 // pred_region
      _
    $region5: #{no_skip_conv_block.1} parent=1 // pred_fallthru
      _
    // Predicated region
    $region6: #{no_skip_conv_block.1} parent=1 // pred_check
      _
    $region7: #{no_skip_conv_block.1} parent=1 // pred_check_branch
      %18 = sbr.rel (0) target = $region9
    $region8: #{no_skip_conv_block.1} parent=1 // pred_region
      _
    $region9: #{no_skip_conv_block.1} parent=1 // pred_fallthru
      _
    // Predicated region
    $region10: #{no_skip_conv_block.1} parent=1 // pred_check
      _
    $region11: #{no_skip_conv_block.1} parent=1 // pred_check_branch
      %20 = sbr.rel (0) target = $region13
    $region12: #{no_skip_conv_block.1} parent=1 // pred_region
      %22 = vsyncadd [#allocation4], 0
      %s23 = sshll.u32 %s2, 4
      %s24 = int_to_ptr.hbm [resolvable:$true] %s23
      %s25 = sshll.u32 [#allocation3], 4
      %s26 = int_to_ptr.vmem [resolvable:$true] %s25
      %31 = dma.hbm_to_vmem [thread:$0]  %s24, 1024, %s26, [#allocation4], 128, 128, 8
    $region13: #{no_skip_conv_block.1} parent=1 // pred_fallthru
      _
    // Predicated region
    $region14: #{no_skip_conv_block.1} parent=1 // pred_check
      _
    $region15: #{no_skip_conv_block.1} parent=1 // pred_check_branch
      %33 = sbr.rel (0) target = $region17
    $region16: #{no_skip_conv_block.1} parent=1 // pred_region
      %35 = vsyncadd [#allocation6], 0
      %s36 = sshll.u32 %s3, 4
      %s37 = int_to_ptr.hbm [resolvable:$true] %s36
      %s38 = sshll.u32 [#allocation5], 4
      %s39 = int_to_ptr.vmem [resolvable:$true] %s38
      %44 = dma.hbm_to_vmem [thread:$0]  %s37, 2048, %s39, [#allocation6], 128, 128, 8
    $region17: #{no_skip_conv_block.1} parent=1 // pred_fallthru
      _
    // Predicated region
    $region18: #{no_skip_conv_block.1} parent=1 // pred_check
      _
    $region19: #{no_skip_conv_block.1} parent=1 // pred_check_branch
      %46 = sbr.rel (0) target = $region21
    $region20: #{no_skip_conv_block.1} parent=1 // pred_region
      _
    $region21: #{no_skip_conv_block.1} parent=1 // pred_fallthru
      _
    // Predicated region
    $region22: #{no_skip_conv_block.1} parent=1 // pred_check
      _
    $region23: #{no_skip_conv_block.1} parent=1 // pred_check_branch
      %48 = sbr.rel (0) target = $region25
    $region24: #{no_skip_conv_block.1} parent=1 // pred_region
      _
    $region25: #{no_skip_conv_block.1} parent=1 // pred_fallthru
      _
    // Predicated region
    $region26: #{no_skip_conv_block.1} parent=1 // pred_check
      _
    $region27: #{no_skip_conv_block.1} parent=1 // pred_check_branch
      %50 = sbr.rel (0) target = $region29
    $region28: #{no_skip_conv_block.1} parent=1 // pred_region
      _
    $region29: #{no_skip_conv_block.1} parent=1 // pred_fallthru
      _
    // Predicated region
    $region30: #{no_skip_conv_block.1} parent=1 // pred_check
      _
    $region31: #{no_skip_conv_block.1} parent=1 // pred_check_branch
      %52 = sbr.rel (0) target = $region33
    $region32: #{no_skip_conv_block.1} parent=1 // pred_region
      %54 = vsyncadd [#allocation6], 0
      %s55 = sshll.u32 %s7, 4
      %s56 = int_to_ptr.hbm [resolvable:$true] %s55
      %s57 = sshll.u32 [#allocation7], 4
      %s58 = int_to_ptr.vmem [resolvable:$true] %s57
      %63 = dma.hbm_to_vmem [thread:$0]  %s56, 2048, %s58, [#allocation6], 128, 128, 8
    $region33: #{no_skip_conv_block.1} parent=1 // pred_fallthru
      _
    // Predicated region
    $region34: #{no_skip_conv_block.1} parent=1 // pred_check
      _
    $region35: #{no_skip_conv_block.1} parent=1 // pred_check_branch
      %65 = sbr.rel (0) target = $region37
    $region36: #{no_skip_conv_block.1} parent=1 // pred_region
      %67 = dma.done [#allocation4], 1024
    $region37: #{no_skip_conv_block.1} parent=1 // pred_fallthru
      _
    // Predicated region
    $region38: #{no_skip_conv_block.1} parent=1 // pred_check
      _
    $region39: #{no_skip_conv_block.1} parent=1 // pred_check_branch
      %69 = sbr.rel (0) target = $region41
    $region40: #{no_skip_conv_block.1} parent=1 // pred_region
      %71 = dma.done [#allocation6], 2048
    $region41: #{no_skip_conv_block.1} parent=1 // pred_fallthru
      _
    // Predicated region
    $region42: #{no_skip_conv_block.1} parent=1 // pred_check
      _
    $region43: #{no_skip_conv_block.1} parent=1 // pred_check_branch
      %73 = sbr.rel (0) target = $region45
    $region44: #{no_skip_conv_block.1} parent=1 // pred_region
      %75 = dma.done [#allocation6], 2048
    $region45: #{no_skip_conv_block.1} parent=1 // pred_fallthru
      _
    %v76 = vld [vmem:[%s1] sm:$0xff]
    %v77 = vld [vmem:[%s1 + $0x8] sm:$0xff]
    %v78 = vld [vmem:[%s1 + $0x10] sm:$0xff]
    %v79 = vld [vmem:[%s1 + $0x18] sm:$0xff]
    %v80 = vld [vmem:[%s1 + $0x20] sm:$0xf]
    %81 = vst [vmem:[#allocation2] sm:$0x1] 0.0
    %82 = vst [vmem:[#allocation2 + $0x25] sm:$0x1] 0.0
    %v83 = vld [vmem:[%s0] sm:$0xff]
    %v84 = vld [vmem:[%s0 + $0x8] sm:$0xff]
    %v85 = vld [vmem:[%s0 + $0x10] sm:$0xff]
    %v86 = vld [vmem:[%s0 + $0x18] sm:$0xff]
    %v87 = vld [vmem:[%s0 + $0x20] sm:$0xf]
    %v88 = vld [vmem:[%s4] sm:$0x1]
    %v89 = vld [vmem:[%s4 + $0x1] sm:$0x1]
    %v90 = vmax.f32 %v83, 0.0
    %v91 = vmax.f32 %v84, 0.0
    %v92 = vmax.f32 %v85, 0.0
    %v93 = vmax.f32 %v86, 0.0
    %v94 = vmax.f32 %v87, 0.0
    %96 = vset.pattern.permute.xlu0 0
    %97 = vperm.xlu0 %96, %v76
    %v98 = vpop.permute.xlu0 %97
    %101 = vset.pattern.permute.xlu0 0
    %102 = vperm.xlu0 %101, %v77
    %v103 = vpop.permute.xlu0 %102
    %106 = vset.pattern.permute.xlu0 0
    %107 = vperm.xlu0 %106, %v78
    %v108 = vpop.permute.xlu0 %107
    %111 = vset.pattern.permute.xlu0 0
    %112 = vperm.xlu0 %111, %v79
    %v113 = vpop.permute.xlu0 %112
    %116 = vset.pattern.permute.xlu0 0
    %117 = vperm.xlu0 %116, %v80
    %v118 = vpop.permute.xlu0 %117
    %v120 = vmul.f32 %v90, %v98
    %v121 = vmul.f32 %v91, %v103
    %v122 = vmul.f32 %v92, %v108
    %v123 = vmul.f32 %v93, %v113
    %v124 = vmul.f32 %v94, %v118
    %vm125 = vcmask 523264
    %v126 = vsel %vm125, %v120, 0.0
    %v127 = vsel %vm125, %v121, 0.0
    %v128 = vadd.f32 %v126, %v127
    %v129 = vsel %vm125, %v122, 0.0
    %v130 = vadd.f32 %v128, %v129
    %v131 = vsel %vm125, %v123, 0.0
    %v132 = vadd.f32 %v130, %v131
    %vm133 = vcmask 519168
    %v134 = vsel %vm133, %v124, 0.0
    %v135 = vadd.f32 %v132, %v134
    %v136 = vrot.slane %v135, 4
    %v137 = vadd.f32 %v135, %v136
    %v138 = vrot.slane %v137, 2
    %v139 = vadd.f32 %v137, %v138
    %v140 = vrot.slane %v139, 1
    %v141 = vadd.f32 %v139, %v140
    %v142 = vmul.f32 %v120, %v90
    %v143 = vmul.f32 %v121, %v91
    %v144 = vmul.f32 %v122, %v92
    %v145 = vmul.f32 %v123, %v93
    %v146 = vmul.f32 %v124, %v94
    %v147 = vsel %vm125, %v142, 0.0
    %v148 = vsel %vm125, %v143, 0.0
    %v149 = vadd.f32 %v147, %v148
    %v150 = vsel %vm125, %v144, 0.0
    %v151 = vadd.f32 %v149, %v150
    %v152 = vsel %vm125, %v145, 0.0
    %v153 = vadd.f32 %v151, %v152
    %v154 = vsel %vm133, %v146, 0.0
    %v155 = vadd.f32 %v153, %v154
    %v156 = vrot.slane %v155, 4
    %v157 = vadd.f32 %v155, %v156
    %v158 = vrot.slane %v157, 2
    %v159 = vadd.f32 %v157, %v158
    %v160 = vrot.slane %v159, 1
    %v161 = vadd.f32 %v159, %v160
    %v162 = vld [vmem:[#allocation3] sm:$0xff]
    %v163 = vld [vmem:[#allocation3 + $0x8] sm:$0xff]
    %v164 = vld [vmem:[#allocation3 + $0x10] sm:$0xff]
    %v165 = vld [vmem:[#allocation3 + $0x18] sm:$0xff]
    %v166 = vld [vmem:[#allocation3 + $0x20] sm:$0xff]
    %v167 = vld [vmem:[#allocation3 + $0x28] sm:$0xff]
    %v168 = vld [vmem:[#allocation3 + $0x30] sm:$0xff]
    %v169 = vld [vmem:[#allocation3 + $0x38] sm:$0xff]
    %v171 = vsel %vm125, %v141, 0
    %173 = vmatpush.msra.mxu0 0.0
    %174 = vmatpush.msra.mxu0 0.0
    %175 = vmatpush.msra.mxu0 0.0
    %176 = vmatpush.msra.mxu0 0.0
    %177 = vmatpush.msra.mxu0 0.0
    %178 = vmatpush.msra.mxu0 0.0
    %179 = vmatpush.msra.mxu0 0.0
    %180 = vmatpush.msra.mxu0 0.0
    %181 = vmatpush.msra.mxu0 %v169
    %182 = vmatpush.msra.mxu0 %v168
    %183 = vmatpush.msra.mxu0 %v167
    %184 = vmatpush.msra.mxu0 %v166
    %185 = vmatpush.msra.mxu0 %v165
    %186 = vmatpush.msra.mxu0 %v164
    %187 = vmatpush.msra.mxu0 %v163
    %188 = vmatpush.msra.mxu0 %v162
    %189 = vmatmul.f32.gmra.mxu0 %v171
    %v190 = vpop.f32.mrf.mxu0
    %v191 = vadd.f32 0.0, %v190
    %192 = vdwg.mxu0
    %v194 = vsel %vm125, %v161, 0
    %196 = vmatpush.msra.mxu0 0.0
    %197 = vmatpush.msra.mxu0 0.0
    %198 = vmatpush.msra.mxu0 0.0
    %199 = vmatpush.msra.mxu0 0.0
    %200 = vmatpush.msra.mxu0 0.0
    %201 = vmatpush.msra.mxu0 0.0
    %202 = vmatpush.msra.mxu0 0.0
    %203 = vmatpush.msra.mxu0 0.0
    %204 = vmatpush.msra.mxu0 %v169
    %205 = vmatpush.msra.mxu0 %v168
    %206 = vmatpush.msra.mxu0 %v167
    %207 = vmatpush.msra.mxu0 %v166
    %208 = vmatpush.msra.mxu0 %v165
    %209 = vmatpush.msra.mxu0 %v164
    %210 = vmatpush.msra.mxu0 %v163
    %211 = vmatpush.msra.mxu0 %v162
    %212 = vmatmul.f32.gmra.mxu0 %v194
    %v213 = vpop.f32.mrf.mxu0
    %v214 = vadd.f32 0.0, %v213
    %215 = vdwg.mxu0
    %v216 = vmul.f32 %v191, %v191
    %v217 = vsub.f32 %v214, %v216
    %v218 = vmax.f32 %v217, 0.0
    %v219 = vadd.f32 %v218, 1e-05
    %v220 = vrsqrt.pop %v219
    %v221 = vmul.f32 %v220, %v219
    %v222 = vmul.f32 %v221, %v220
    %v223 = vmul.f32 0.5, %v222
    %v224 = vsub.f32 1.5, %v223
    %v225 = vmul.f32 %v220, %v224
    %vm226 = vweird.f32 %v219
    %vm227 = vweird.f32 %v220
    %vm228 = vmor %vm226, %vm227
    %v229 = vsel %vm228, %v220, %v225
    %v230 = vmul.f32 %v88, %v229
    %v231 = vmul.f32 %v191, %v230
    %v232 = vsub.f32 %v89, %v231
    %v233 = vperm.slane %v230, 0
    %v234 = vmul.f32 %v90, %v233
    %v235 = vmul.f32 %v91, %v233
    %v236 = vmul.f32 %v92, %v233
    %v237 = vmul.f32 %v93, %v233
    %v238 = vmul.f32 %v94, %v233
    %v239 = vperm.slane %v232, 0
    %v240 = vadd.f32 %v234, %v239
    %v241 = vadd.f32 %v235, %v239
    %v242 = vadd.f32 %v236, %v239
    %v243 = vadd.f32 %v237, %v239
    %v244 = vadd.f32 %v238, %v239
    %v245 = vmul.f32 %v240, %v98
    %v246 = vmul.f32 %v241, %v103
    %v247 = vmul.f32 %v242, %v108
    %v248 = vmul.f32 %v243, %v113
    %v249 = vmul.f32 %v244, %v118
    %v250 = vld [vmem:[%s4 + $0x2] sm:$0x1]
    %251 = vst.msk [vmem:[#allocation2 + $0x1] sm:$0xff] %vm125, %v245
    %252 = vst.msk [vmem:[#allocation2 + $0x9] sm:$0xff] %vm125, %v246
    %253 = vst.msk [vmem:[#allocation2 + $0x11] sm:$0xff] %vm125, %v247
    %254 = vst.msk [vmem:[#allocation2 + $0x19] sm:$0xff] %vm125, %v248
    %255 = vst.msk [vmem:[#allocation2 + $0x21] sm:$0xf] %vm133, %v249
    %v256 = vld [vmem:[#allocation2] sm:$0xff]
    %v257 = vld [vmem:[#allocation2 + $0x8] sm:$0xff]
    %v258 = vld [vmem:[#allocation2 + $0x10] sm:$0xff]
    %v259 = vld [vmem:[#allocation2 + $0x18] sm:$0xff]
    %v260 = vld [vmem:[#allocation2 + $0x20] sm:$0xf]
    %v261 = vld [vmem:[%s5] sm:$0xff]
    %v262 = vld [vmem:[%s5 + $0x8] sm:$0xff]
    %v263 = vld [vmem:[%s5 + $0x10] sm:$0xff]
    %v264 = vld [vmem:[%s5 + $0x18] sm:$0xff]
    %v265 = vld [vmem:[%s5 + $0x20] sm:$0xff]
    %v266 = vld [vmem:[%s5 + $0x28] sm:$0xff]
    %v267 = vld [vmem:[%s5 + $0x30] sm:$0xff]
    %v268 = vld [vmem:[%s5 + $0x38] sm:$0xff]
    %v269 = vperm.slane %v250, 0
    %v271 = vsel %vm125, %v256, 0
    %v274 = vsel %vm125, %v257, 0
    %v277 = vsel %vm125, %v258, 0
    %v280 = vsel %vm125, %v259, 0
    %v283 = vsel %vm125, %v260, 0
    %285 = vmatpush.msra.mxu0 0.0
    %286 = vmatpush.msra.mxu0 0.0
    %287 = vmatpush.msra.mxu0 0.0
    %288 = vmatpush.msra.mxu0 0.0
    %289 = vmatpush.msra.mxu0 0.0
    %290 = vmatpush.msra.mxu0 0.0
    %291 = vmatpush.msra.mxu0 0.0
    %292 = vmatpush.msra.mxu0 0.0
    %293 = vmatpush.msra.mxu0 %v268
    %294 = vmatpush.msra.mxu0 %v267
    %295 = vmatpush.msra.mxu0 %v266
    %296 = vmatpush.msra.mxu0 %v265
    %297 = vmatpush.msra.mxu0 %v264
    %298 = vmatpush.msra.mxu0 %v263
    %299 = vmatpush.msra.mxu0 %v262
    %300 = vmatpush.msra.mxu0 %v261
    %301 = vmatmul.f32.gmra.mxu0 %v271
    %v302 = vpop.f32.mrf.mxu0
    %v303 = vadd.f32 %v269, %v302
    %304 = vmatmul.f32.gmra.mxu0 %v274
    %v305 = vpop.f32.mrf.mxu0
    %v306 = vadd.f32 %v269, %v305
    %307 = vmatmul.f32.gmra.mxu0 %v277
    %v308 = vpop.f32.mrf.mxu0
    %v309 = vadd.f32 %v269, %v308
    %310 = vmatmul.f32.gmra.mxu0 %v280
    %v311 = vpop.f32.mrf.mxu0
    %v312 = vadd.f32 %v269, %v311
    %313 = vmatmul.f32.gmra.mxu0 %v283
    %v314 = vpop.f32.mrf.mxu0
    %v315 = vadd.f32 %v269, %v314
    %316 = vdwg.mxu0
    %v317 = vld [vmem:[#allocation2 + $0x1] sm:$0xff]
    %v318 = vld [vmem:[#allocation2 + $0x9] sm:$0xff]
    %v319 = vld [vmem:[#allocation2 + $0x11] sm:$0xff]
    %v320 = vld [vmem:[#allocation2 + $0x19] sm:$0xff]
    %v321 = vld [vmem:[#allocation2 + $0x21] sm:$0xf]
    %s322 = scalar_lea.vmem %s5, 64
    %v323 = vld [vmem:[%s322] sm:$0xff]
    %v324 = vld [vmem:[%s322 + $0x8] sm:$0xff]
    %v325 = vld [vmem:[%s322 + $0x10] sm:$0xff]
    %v326 = vld [vmem:[%s322 + $0x18] sm:$0xff]
    %v327 = vld [vmem:[%s322 + $0x20] sm:$0xff]
    %v328 = vld [vmem:[%s322 + $0x28] sm:$0xff]
    %v329 = vld [vmem:[%s322 + $0x30] sm:$0xff]
    %v330 = vld [vmem:[%s322 + $0x38] sm:$0xff]
    %v332 = vsel %vm125, %v317, 0
    %v335 = vsel %vm125, %v318, 0
    %v338 = vsel %vm125, %v319, 0
    %v341 = vsel %vm125, %v320, 0
    %v344 = vsel %vm125, %v321, 0
    %346 = vmatpush.msra.mxu0 0.0
    %347 = vmatpush.msra.mxu0 0.0
    %348 = vmatpush.msra.mxu0 0.0
    %349 = vmatpush.msra.mxu0 0.0
    %350 = vmatpush.msra.mxu0 0.0
    %351 = vmatpush.msra.mxu0 0.0
    %352 = vmatpush.msra.mxu0 0.0
    %353 = vmatpush.msra.mxu0 0.0
    %354 = vmatpush.msra.mxu0 %v330
    %355 = vmatpush.msra.mxu0 %v329
    %356 = vmatpush.msra.mxu0 %v328
    %357 = vmatpush.msra.mxu0 %v327
    %358 = vmatpush.msra.mxu0 %v326
    %359 = vmatpush.msra.mxu0 %v325
    %360 = vmatpush.msra.mxu0 %v324
    %361 = vmatpush.msra.mxu0 %v323
    %362 = vmatmul.f32.gmra.mxu0 %v332
    %v363 = vpop.f32.mrf.mxu0
    %v364 = vadd.f32 0.0, %v363
    %365 = vmatmul.f32.gmra.mxu0 %v335
    %v366 = vpop.f32.mrf.mxu0
    %v367 = vadd.f32 0.0, %v366
    %368 = vmatmul.f32.gmra.mxu0 %v338
    %v369 = vpop.f32.mrf.mxu0
    %v370 = vadd.f32 0.0, %v369
    %371 = vmatmul.f32.gmra.mxu0 %v341
    %v372 = vpop.f32.mrf.mxu0
    %v373 = vadd.f32 0.0, %v372
    %374 = vmatmul.f32.gmra.mxu0 %v344
    %v375 = vpop.f32.mrf.mxu0
    %v376 = vadd.f32 0.0, %v375
    %377 = vdwg.mxu0
    %v378 = vadd.f32 %v303, %v364
    %v379 = vadd.f32 %v306, %v367
    %v380 = vadd.f32 %v309, %v370
    %v381 = vadd.f32 %v312, %v373
    %v382 = vadd.f32 %v315, %v376
    %v383 = vld [vmem:[#allocation2 + $0x2] sm:$0xff]
    %v384 = vld [vmem:[#allocation2 + $0xa] sm:$0xff]
    %v385 = vld [vmem:[#allocation2 + $0x12] sm:$0xff]
    %v386 = vld [vmem:[#allocation2 + $0x1a] sm:$0xff]
    %v387 = vld [vmem:[#allocation2 + $0x22] sm:$0xf]
    %s388 = scalar_lea.vmem %s5, 128
    %v389 = vld [vmem:[%s388] sm:$0xff]
    %v390 = vld [vmem:[%s388 + $0x8] sm:$0xff]
    %v391 = vld [vmem:[%s388 + $0x10] sm:$0xff]
    %v392 = vld [vmem:[%s388 + $0x18] sm:$0xff]
    %v393 = vld [vmem:[%s388 + $0x20] sm:$0xff]
    %v394 = vld [vmem:[%s388 + $0x28] sm:$0xff]
    %v395 = vld [vmem:[%s388 + $0x30] sm:$0xff]
    %v396 = vld [vmem:[%s388 + $0x38] sm:$0xff]
    %v398 = vsel %vm125, %v383, 0
    %v401 = vsel %vm125, %v384, 0
    %v404 = vsel %vm125, %v385, 0
    %v407 = vsel %vm125, %v386, 0
    %v410 = vsel %vm125, %v387, 0
    %412 = vmatpush.msra.mxu0 0.0
    %413 = vmatpush.msra.mxu0 0.0
    %414 = vmatpush.msra.mxu0 0.0
    %415 = vmatpush.msra.mxu0 0.0
    %416 = vmatpush.msra.mxu0 0.0
    %417 = vmatpush.msra.mxu0 0.0
    %418 = vmatpush.msra.mxu0 0.0
    %419 = vmatpush.msra.mxu0 0.0
    %420 = vmatpush.msra.mxu0 %v396
    %421 = vmatpush.msra.mxu0 %v395
    %422 = vmatpush.msra.mxu0 %v394
    %423 = vmatpush.msra.mxu0 %v393
    %424 = vmatpush.msra.mxu0 %v392
    %425 = vmatpush.msra.mxu0 %v391
    %426 = vmatpush.msra.mxu0 %v390
    %427 = vmatpush.msra.mxu0 %v389
    %428 = vmatmul.f32.gmra.mxu0 %v398
    %v429 = vpop.f32.mrf.mxu0
    %v430 = vadd.f32 0.0, %v429
    %431 = vmatmul.f32.gmra.mxu0 %v401
    %v432 = vpop.f32.mrf.mxu0
    %v433 = vadd.f32 0.0, %v432
    %434 = vmatmul.f32.gmra.mxu0 %v404
    %v435 = vpop.f32.mrf.mxu0
    %v436 = vadd.f32 0.0, %v435
    %437 = vmatmul.f32.gmra.mxu0 %v407
    %v438 = vpop.f32.mrf.mxu0
    %v439 = vadd.f32 0.0, %v438
    %440 = vmatmul.f32.gmra.mxu0 %v410
    %v441 = vpop.f32.mrf.mxu0
    %v442 = vadd.f32 0.0, %v441
    %443 = vdwg.mxu0
    %v444 = vadd.f32 %v378, %v430
    %v445 = vadd.f32 %v379, %v433
    %v446 = vadd.f32 %v380, %v436
    %v447 = vadd.f32 %v381, %v439
    %v448 = vadd.f32 %v382, %v442
    %v449 = vld [vmem:[%s4 + $0x3] sm:$0x1]
    %v450 = vld [vmem:[%s4 + $0x4] sm:$0x1]
    %v451 = vmax.f32 %v444, 0.0
    %v452 = vmax.f32 %v445, 0.0
    %v453 = vmax.f32 %v446, 0.0
    %v454 = vmax.f32 %v447, 0.0
    %v455 = vmax.f32 %v448, 0.0
    %v456 = vmul.f32 %v451, %v98
    %v457 = vmul.f32 %v452, %v103
    %v458 = vmul.f32 %v453, %v108
    %v459 = vmul.f32 %v454, %v113
    %v460 = vmul.f32 %v455, %v118
    %v461 = vadd.f32 %v456, %v457
    %v462 = vadd.f32 %v461, %v458
    %v463 = vadd.f32 %v462, %v459
    %vm464 = vcmask 1043456
    %v465 = vsel %vm464, %v460, 0.0
    %v466 = vadd.f32 %v463, %v465
    %v467 = vrot.slane %v466, 4
    %v468 = vadd.f32 %v466, %v467
    %v469 = vrot.slane %v468, 2
    %v470 = vadd.f32 %v468, %v469
    %v471 = vrot.slane %v470, 1
    %v472 = vadd.f32 %v470, %v471
    %v473 = vmul.f32 %v456, %v451
    %v474 = vmul.f32 %v457, %v452
    %v475 = vmul.f32 %v458, %v453
    %v476 = vmul.f32 %v459, %v454
    %v477 = vmul.f32 %v460, %v455
    %v478 = vadd.f32 %v473, %v474
    %v479 = vadd.f32 %v478, %v475
    %v480 = vadd.f32 %v479, %v476
    %v481 = vsel %vm464, %v477, 0.0
    %v482 = vadd.f32 %v480, %v481
    %v483 = vrot.slane %v482, 4
    %v484 = vadd.f32 %v482, %v483
    %v485 = vrot.slane %v484, 2
    %v486 = vadd.f32 %v484, %v485
    %v487 = vrot.slane %v486, 1
    %v488 = vadd.f32 %v486, %v487
    %v489 = vld [vmem:[#allocation5] sm:$0xff]
    %v490 = vld [vmem:[#allocation5 + $0x8] sm:$0xff]
    %v491 = vld [vmem:[#allocation5 + $0x10] sm:$0xff]
    %v492 = vld [vmem:[#allocation5 + $0x18] sm:$0xff]
    %v493 = vld [vmem:[#allocation5 + $0x20] sm:$0xff]
    %v494 = vld [vmem:[#allocation5 + $0x28] sm:$0xff]
    %v495 = vld [vmem:[#allocation5 + $0x30] sm:$0xff]
    %v496 = vld [vmem:[#allocation5 + $0x38] sm:$0xff]
    %v497 = vld [vmem:[#allocation5 + $0x40] sm:$0xff]
    %v498 = vld [vmem:[#allocation5 + $0x48] sm:$0xff]
    %v499 = vld [vmem:[#allocation5 + $0x50] sm:$0xff]
    %v500 = vld [vmem:[#allocation5 + $0x58] sm:$0xff]
    %v501 = vld [vmem:[#allocation5 + $0x60] sm:$0xff]
    %v502 = vld [vmem:[#allocation5 + $0x68] sm:$0xff]
    %v503 = vld [vmem:[#allocation5 + $0x70] sm:$0xff]
    %v504 = vld [vmem:[#allocation5 + $0x78] sm:$0xff]
    %505 = vmatpush.msra.mxu0 %v504
    %506 = vmatpush.msra.mxu0 %v503
    %507 = vmatpush.msra.mxu0 %v502
    %508 = vmatpush.msra.mxu0 %v501
    %509 = vmatpush.msra.mxu0 %v500
    %510 = vmatpush.msra.mxu0 %v499
    %511 = vmatpush.msra.mxu0 %v498
    %512 = vmatpush.msra.mxu0 %v497
    %513 = vmatpush.msra.mxu0 %v496
    %514 = vmatpush.msra.mxu0 %v495
    %515 = vmatpush.msra.mxu0 %v494
    %516 = vmatpush.msra.mxu0 %v493
    %517 = vmatpush.msra.mxu0 %v492
    %518 = vmatpush.msra.mxu0 %v491
    %519 = vmatpush.msra.mxu0 %v490
    %520 = vmatpush.msra.mxu0 %v489
    %521 = vmatmul.f32.gmra.mxu0 %v472
    %v522 = vpop.f32.mrf.mxu0
    %v523 = vadd.f32 0.0, %v522
    %524 = vdwg.mxu0
    %525 = vmatpush.msra.mxu0 %v504
    %526 = vmatpush.msra.mxu0 %v503
    %527 = vmatpush.msra.mxu0 %v502
    %528 = vmatpush.msra.mxu0 %v501
    %529 = vmatpush.msra.mxu0 %v500
    %530 = vmatpush.msra.mxu0 %v499
    %531 = vmatpush.msra.mxu0 %v498
    %532 = vmatpush.msra.mxu0 %v497
    %533 = vmatpush.msra.mxu0 %v496
    %534 = vmatpush.msra.mxu0 %v495
    %535 = vmatpush.msra.mxu0 %v494
    %536 = vmatpush.msra.mxu0 %v493
    %537 = vmatpush.msra.mxu0 %v492
    %538 = vmatpush.msra.mxu0 %v491
    %539 = vmatpush.msra.mxu0 %v490
    %540 = vmatpush.msra.mxu0 %v489
    %541 = vmatmul.f32.gmra.mxu0 %v488
    %v542 = vpop.f32.mrf.mxu0
    %v543 = vadd.f32 0.0, %v542
    %544 = vdwg.mxu0
    %v545 = vmul.f32 %v523, %v523
    %v546 = vsub.f32 %v543, %v545
    %v547 = vmax.f32 %v546, 0.0
    %v548 = vadd.f32 %v547, 1e-05
    %v549 = vrsqrt.pop %v548
    %v550 = vmul.f32 %v549, %v548
    %v551 = vmul.f32 %v550, %v549
    %v552 = vmul.f32 0.5, %v551
    %v553 = vsub.f32 1.5, %v552
    %v554 = vmul.f32 %v549, %v553
    %vm555 = vweird.f32 %v548
    %vm556 = vweird.f32 %v549
    %vm557 = vmor %vm555, %vm556
    %v558 = vsel %vm557, %v549, %v554
    %v559 = vmul.f32 %v449, %v558
    %v560 = vmul.f32 %v523, %v559
    %v561 = vsub.f32 %v450, %v560
    %v562 = vperm.slane %v559, 0
    %v563 = vmul.f32 %v451, %v562
    %v564 = vmul.f32 %v452, %v562
    %v565 = vmul.f32 %v453, %v562
    %v566 = vmul.f32 %v454, %v562
    %v567 = vmul.f32 %v455, %v562
    %v568 = vperm.slane %v561, 0
    %v569 = vadd.f32 %v563, %v568
    %v570 = vadd.f32 %v564, %v568
    %v571 = vadd.f32 %v565, %v568
    %v572 = vadd.f32 %v566, %v568
    %v573 = vadd.f32 %v567, %v568
    %v574 = vmul.f32 %v569, %v98
    %v575 = vmul.f32 %v570, %v103
    %v576 = vmul.f32 %v571, %v108
    %v577 = vmul.f32 %v572, %v113
    %v578 = vmul.f32 %v573, %v118
    %v579 = vld [vmem:[%s4 + $0x5] sm:$0x1]
    %580 = vst [vmem:[#allocation2 + $0x1] sm:$0xff] %v574
    %581 = vst [vmem:[#allocation2 + $0x9] sm:$0xff] %v575
    %582 = vst [vmem:[#allocation2 + $0x11] sm:$0xff] %v576
    %583 = vst [vmem:[#allocation2 + $0x19] sm:$0xff] %v577
    %584 = vst [vmem:[#allocation2 + $0x21] sm:$0xf] %v578
    %v585 = vld [vmem:[#allocation2] sm:$0xff]
    %v586 = vld [vmem:[#allocation2 + $0x8] sm:$0xff]
    %v587 = vld [vmem:[#allocation2 + $0x10] sm:$0xff]
    %v588 = vld [vmem:[#allocation2 + $0x18] sm:$0xff]
    %v589 = vld [vmem:[#allocation2 + $0x20] sm:$0xf]
    %v590 = vld [vmem:[%s6] sm:$0xff]
    %v591 = vld [vmem:[%s6 + $0x8] sm:$0xff]
    %v592 = vld [vmem:[%s6 + $0x10] sm:$0xff]
    %v593 = vld [vmem:[%s6 + $0x18] sm:$0xff]
    %v594 = vld [vmem:[%s6 + $0x20] sm:$0xff]
    %v595 = vld [vmem:[%s6 + $0x28] sm:$0xff]
    %v596 = vld [vmem:[%s6 + $0x30] sm:$0xff]
    %v597 = vld [vmem:[%s6 + $0x38] sm:$0xff]
    %v598 = vld [vmem:[%s6 + $0x40] sm:$0xff]
    %v599 = vld [vmem:[%s6 + $0x48] sm:$0xff]
    %v600 = vld [vmem:[%s6 + $0x50] sm:$0xff]
    %v601 = vld [vmem:[%s6 + $0x58] sm:$0xff]
    %v602 = vld [vmem:[%s6 + $0x60] sm:$0xff]
    %v603 = vld [vmem:[%s6 + $0x68] sm:$0xff]
    %v604 = vld [vmem:[%s6 + $0x70] sm:$0xff]
    %v605 = vld [vmem:[%s6 + $0x78] sm:$0xff]
    %v606 = vperm.slane %v579, 0
    %607 = vmatpush.msra.mxu0 %v605
    %608 = vmatpush.msra.mxu0 %v604
    %609 = vmatpush.msra.mxu0 %v603
    %610 = vmatpush.msra.mxu0 %v602
    %611 = vmatpush.msra.mxu0 %v601
    %612 = vmatpush.msra.mxu0 %v600
    %613 = vmatpush.msra.mxu0 %v599
    %614 = vmatpush.msra.mxu0 %v598
    %615 = vmatpush.msra.mxu0 %v597
    %616 = vmatpush.msra.mxu0 %v596
    %617 = vmatpush.msra.mxu0 %v595
    %618 = vmatpush.msra.mxu0 %v594
    %619 = vmatpush.msra.mxu0 %v593
    %620 = vmatpush.msra.mxu0 %v592
    %621 = vmatpush.msra.mxu0 %v591
    %622 = vmatpush.msra.mxu0 %v590
    %623 = vmatmul.f32.gmra.mxu0 %v585
    %v624 = vpop.f32.mrf.mxu0
    %v625 = vadd.f32 %v606, %v624
    %626 = vmatmul.f32.gmra.mxu0 %v586
    %v627 = vpop.f32.mrf.mxu0
    %v628 = vadd.f32 %v606, %v627
    %629 = vmatmul.f32.gmra.mxu0 %v587
    %v630 = vpop.f32.mrf.mxu0
    %v631 = vadd.f32 %v606, %v630
    %632 = vmatmul.f32.gmra.mxu0 %v588
    %v633 = vpop.f32.mrf.mxu0
    %v634 = vadd.f32 %v606, %v633
    %635 = vmatmul.f32.gmra.mxu0 %v589
    %v636 = vpop.f32.mrf.mxu0
    %v637 = vadd.f32 %v606, %v636
    %638 = vdwg.mxu0
    %v639 = vld [vmem:[#allocation2 + $0x1] sm:$0xff]
    %v640 = vld [vmem:[#allocation2 + $0x9] sm:$0xff]
    %v641 = vld [vmem:[#allocation2 + $0x11] sm:$0xff]
    %v642 = vld [vmem:[#allocation2 + $0x19] sm:$0xff]
    %v643 = vld [vmem:[#allocation2 + $0x21] sm:$0xf]
    %s644 = scalar_lea.vmem %s6, 128
    %v645 = vld [vmem:[%s644] sm:$0xff]
    %v646 = vld [vmem:[%s644 + $0x8] sm:$0xff]
    %v647 = vld [vmem:[%s644 + $0x10] sm:$0xff]
    %v648 = vld [vmem:[%s644 + $0x18] sm:$0xff]
    %v649 = vld [vmem:[%s644 + $0x20] sm:$0xff]
    %v650 = vld [vmem:[%s644 + $0x28] sm:$0xff]
    %v651 = vld [vmem:[%s644 + $0x30] sm:$0xff]
    %v652 = vld [vmem:[%s644 + $0x38] sm:$0xff]
    %v653 = vld [vmem:[%s644 + $0x40] sm:$0xff]
    %v654 = vld [vmem:[%s644 + $0x48] sm:$0xff]
    %v655 = vld [vmem:[%s644 + $0x50] sm:$0xff]
    %v656 = vld [vmem:[%s644 + $0x58] sm:$0xff]
    %v657 = vld [vmem:[%s644 + $0x60] sm:$0xff]
    %v658 = vld [vmem:[%s644 + $0x68] sm:$0xff]
    %v659 = vld [vmem:[%s644 + $0x70] sm:$0xff]
    %v660 = vld [vmem:[%s644 + $0x78] sm:$0xff]
    %661 = vmatpush.msra.mxu0 %v660
    %662 = vmatpush.msra.mxu0 %v659
    %663 = vmatpush.msra.mxu0 %v658
    %664 = vmatpush.msra.mxu0 %v657
    %665 = vmatpush.msra.mxu0 %v656
    %666 = vmatpush.msra.mxu0 %v655
    %667 = vmatpush.msra.mxu0 %v654
    %668 = vmatpush.msra.mxu0 %v653
    %669 = vmatpush.msra.mxu0 %v652
    %670 = vmatpush.msra.mxu0 %v651
    %671 = vmatpush.msra.mxu0 %v650
    %672 = vmatpush.msra.mxu0 %v649
    %673 = vmatpush.msra.mxu0 %v648
    %674 = vmatpush.msra.mxu0 %v647
    %675 = vmatpush.msra.mxu0 %v646
    %676 = vmatpush.msra.mxu0 %v645
    %677 = vmatmul.f32.gmra.mxu0 %v639
    %v678 = vpop.f32.mrf.mxu0
    %v679 = vadd.f32 0.0, %v678
    %680 = vmatmul.f32.gmra.mxu0 %v640
    %v681 = vpop.f32.mrf.mxu0
    %v682 = vadd.f32 0.0, %v681
    %683 = vmatmul.f32.gmra.mxu0 %v641
    %v684 = vpop.f32.mrf.mxu0
    %v685 = vadd.f32 0.0, %v684
    %686 = vmatmul.f32.gmra.mxu0 %v642
    %v687 = vpop.f32.mrf.mxu0
    %v688 = vadd.f32 0.0, %v687
    %689 = vmatmul.f32.gmra.mxu0 %v643
    %v690 = vpop.f32.mrf.mxu0
    %v691 = vadd.f32 0.0, %v690
    %692 = vdwg.mxu0
    %v693 = vadd.f32 %v625, %v679
    %v694 = vadd.f32 %v628, %v682
    %v695 = vadd.f32 %v631, %v685
    %v696 = vadd.f32 %v634, %v688
    %v697 = vadd.f32 %v637, %v691
    %v698 = vld [vmem:[#allocation2 + $0x2] sm:$0xff]
    %v699 = vld [vmem:[#allocation2 + $0xa] sm:$0xff]
    %v700 = vld [vmem:[#allocation2 + $0x12] sm:$0xff]
    %v701 = vld [vmem:[#allocation2 + $0x1a] sm:$0xff]
    %v702 = vld [vmem:[#allocation2 + $0x22] sm:$0xf]
    %s703 = scalar_lea.vmem %s6, 256
    %v704 = vld [vmem:[%s703] sm:$0xff]
    %v705 = vld [vmem:[%s703 + $0x8] sm:$0xff]
    %v706 = vld [vmem:[%s703 + $0x10] sm:$0xff]
    %v707 = vld [vmem:[%s703 + $0x18] sm:$0xff]
    %v708 = vld [vmem:[%s703 + $0x20] sm:$0xff]
    %v709 = vld [vmem:[%s703 + $0x28] sm:$0xff]
    %v710 = vld [vmem:[%s703 + $0x30] sm:$0xff]
    %v711 = vld [vmem:[%s703 + $0x38] sm:$0xff]
    %v712 = vld [vmem:[%s703 + $0x40] sm:$0xff]
    %v713 = vld [vmem:[%s703 + $0x48] sm:$0xff]
    %v714 = vld [vmem:[%s703 + $0x50] sm:$0xff]
    %v715 = vld [vmem:[%s703 + $0x58] sm:$0xff]
    %v716 = vld [vmem:[%s703 + $0x60] sm:$0xff]
    %v717 = vld [vmem:[%s703 + $0x68] sm:$0xff]
    %v718 = vld [vmem:[%s703 + $0x70] sm:$0xff]
    %v719 = vld [vmem:[%s703 + $0x78] sm:$0xff]
    %720 = vmatpush.msra.mxu0 %v719
    %721 = vmatpush.msra.mxu0 %v718
    %722 = vmatpush.msra.mxu0 %v717
    %723 = vmatpush.msra.mxu0 %v716
    %724 = vmatpush.msra.mxu0 %v715
    %725 = vmatpush.msra.mxu0 %v714
    %726 = vmatpush.msra.mxu0 %v713
    %727 = vmatpush.msra.mxu0 %v712
    %728 = vmatpush.msra.mxu0 %v711
    %729 = vmatpush.msra.mxu0 %v710
    %730 = vmatpush.msra.mxu0 %v709
    %731 = vmatpush.msra.mxu0 %v708
    %732 = vmatpush.msra.mxu0 %v707
    %733 = vmatpush.msra.mxu0 %v706
    %734 = vmatpush.msra.mxu0 %v705
    %735 = vmatpush.msra.mxu0 %v704
    %736 = vmatmul.f32.gmra.mxu0 %v698
    %v737 = vpop.f32.mrf.mxu0
    %v738 = vadd.f32 0.0, %v737
    %739 = vmatmul.f32.gmra.mxu0 %v699
    %v740 = vpop.f32.mrf.mxu0
    %v741 = vadd.f32 0.0, %v740
    %742 = vmatmul.f32.gmra.mxu0 %v700
    %v743 = vpop.f32.mrf.mxu0
    %v744 = vadd.f32 0.0, %v743
    %745 = vmatmul.f32.gmra.mxu0 %v701
    %v746 = vpop.f32.mrf.mxu0
    %v747 = vadd.f32 0.0, %v746
    %748 = vmatmul.f32.gmra.mxu0 %v702
    %v749 = vpop.f32.mrf.mxu0
    %v750 = vadd.f32 0.0, %v749
    %751 = vdwg.mxu0
    %v752 = vadd.f32 %v693, %v738
    %v753 = vadd.f32 %v694, %v741
    %v754 = vadd.f32 %v695, %v744
    %v755 = vadd.f32 %v696, %v747
    %v756 = vadd.f32 %v697, %v750
    %v757 = vld [vmem:[%s4 + $0x6] sm:$0x1]
    %v758 = vld [vmem:[%s4 + $0x7] sm:$0x1]
    %v759 = vmax.f32 %v752, 0.0
    %v760 = vmax.f32 %v753, 0.0
    %v761 = vmax.f32 %v754, 0.0
    %v762 = vmax.f32 %v755, 0.0
    %v763 = vmax.f32 %v756, 0.0
    %v764 = vmul.f32 %v759, %v98
    %v765 = vmul.f32 %v760, %v103
    %v766 = vmul.f32 %v761, %v108
    %v767 = vmul.f32 %v762, %v113
    %v768 = vmul.f32 %v763, %v118
    %v769 = vadd.f32 %v764, %v765
    %v770 = vadd.f32 %v769, %v766
    %v771 = vadd.f32 %v770, %v767
    %v772 = vsel %vm464, %v768, 0.0
    %v773 = vadd.f32 %v771, %v772
    %v774 = vrot.slane %v773, 4
    %v775 = vadd.f32 %v773, %v774
    %v776 = vrot.slane %v775, 2
    %v777 = vadd.f32 %v775, %v776
    %v778 = vrot.slane %v777, 1
    %v779 = vadd.f32 %v777, %v778
    %v780 = vmul.f32 %v764, %v759
    %v781 = vmul.f32 %v765, %v760
    %v782 = vmul.f32 %v766, %v761
    %v783 = vmul.f32 %v767, %v762
    %v784 = vmul.f32 %v768, %v763
    %v785 = vadd.f32 %v780, %v781
    %v786 = vadd.f32 %v785, %v782
    %v787 = vadd.f32 %v786, %v783
    %v788 = vsel %vm464, %v784, 0.0
    %v789 = vadd.f32 %v787, %v788
    %v790 = vrot.slane %v789, 4
    %v791 = vadd.f32 %v789, %v790
    %v792 = vrot.slane %v791, 2
    %v793 = vadd.f32 %v791, %v792
    %v794 = vrot.slane %v793, 1
    %v795 = vadd.f32 %v793, %v794
    %v796 = vld [vmem:[#allocation5] sm:$0xff]
    %v797 = vld [vmem:[#allocation5 + $0x8] sm:$0xff]
    %v798 = vld [vmem:[#allocation5 + $0x10] sm:$0xff]
    %v799 = vld [vmem:[#allocation5 + $0x18] sm:$0xff]
    %v800 = vld [vmem:[#allocation5 + $0x20] sm:$0xff]
    %v801 = vld [vmem:[#allocation5 + $0x28] sm:$0xff]
    %v802 = vld [vmem:[#allocation5 + $0x30] sm:$0xff]
    %v803 = vld [vmem:[#allocation5 + $0x38] sm:$0xff]
    %v804 = vld [vmem:[#allocation5 + $0x40] sm:$0xff]
    %v805 = vld [vmem:[#allocation5 + $0x48] sm:$0xff]
    %v806 = vld [vmem:[#allocation5 + $0x50] sm:$0xff]
    %v807 = vld [vmem:[#allocation5 + $0x58] sm:$0xff]
    %v808 = vld [vmem:[#allocation5 + $0x60] sm:$0xff]
    %v809 = vld [vmem:[#allocation5 + $0x68] sm:$0xff]
    %v810 = vld [vmem:[#allocation5 + $0x70] sm:$0xff]
    %v811 = vld [vmem:[#allocation5 + $0x78] sm:$0xff]
    %812 = vmatpush.msra.mxu0 %v811
    %813 = vmatpush.msra.mxu0 %v810
    %814 = vmatpush.msra.mxu0 %v809
    %815 = vmatpush.msra.mxu0 %v808
    %816 = vmatpush.msra.mxu0 %v807
    %817 = vmatpush.msra.mxu0 %v806
    %818 = vmatpush.msra.mxu0 %v805
    %819 = vmatpush.msra.mxu0 %v804
    %820 = vmatpush.msra.mxu0 %v803
    %821 = vmatpush.msra.mxu0 %v802
    %822 = vmatpush.msra.mxu0 %v801
    %823 = vmatpush.msra.mxu0 %v800
    %824 = vmatpush.msra.mxu0 %v799
    %825 = vmatpush.msra.mxu0 %v798
    %826 = vmatpush.msra.mxu0 %v797
    %827 = vmatpush.msra.mxu0 %v796
    %828 = vmatmul.f32.gmra.mxu0 %v779
    %v829 = vpop.f32.mrf.mxu0
    %v830 = vadd.f32 0.0, %v829
    %831 = vdwg.mxu0
    %832 = vmatpush.msra.mxu0 %v811
    %833 = vmatpush.msra.mxu0 %v810
    %834 = vmatpush.msra.mxu0 %v809
    %835 = vmatpush.msra.mxu0 %v808
    %836 = vmatpush.msra.mxu0 %v807
    %837 = vmatpush.msra.mxu0 %v806
    %838 = vmatpush.msra.mxu0 %v805
    %839 = vmatpush.msra.mxu0 %v804
    %840 = vmatpush.msra.mxu0 %v803
    %841 = vmatpush.msra.mxu0 %v802
    %842 = vmatpush.msra.mxu0 %v801
    %843 = vmatpush.msra.mxu0 %v800
    %844 = vmatpush.msra.mxu0 %v799
    %845 = vmatpush.msra.mxu0 %v798
    %846 = vmatpush.msra.mxu0 %v797
    %847 = vmatpush.msra.mxu0 %v796
    %848 = vmatmul.f32.gmra.mxu0 %v795
    %v849 = vpop.f32.mrf.mxu0
    %v850 = vadd.f32 0.0, %v849
    %851 = vdwg.mxu0
    %v852 = vmul.f32 %v830, %v830
    %v853 = vsub.f32 %v850, %v852
    %v854 = vmax.f32 %v853, 0.0
    %v855 = vadd.f32 %v854, 1e-05
    %v856 = vrsqrt.pop %v855
    %v857 = vmul.f32 %v856, %v855
    %v858 = vmul.f32 %v857, %v856
    %v859 = vmul.f32 0.5, %v858
    %v860 = vsub.f32 1.5, %v859
    %v861 = vmul.f32 %v856, %v860
    %vm862 = vweird.f32 %v855
    %vm863 = vweird.f32 %v856
    %vm864 = vmor %vm862, %vm863
    %v865 = vsel %vm864, %v856, %v861
    %v866 = vmul.f32 %v757, %v865
    %v867 = vmul.f32 %v830, %v866
    %v868 = vsub.f32 %v758, %v867
    %v869 = vperm.slane %v866, 0
    %v870 = vmul.f32 %v759, %v869
    %v871 = vmul.f32 %v760, %v869
    %v872 = vmul.f32 %v761, %v869
    %v873 = vmul.f32 %v762, %v869
    %v874 = vmul.f32 %v763, %v869
    %v875 = vperm.slane %v868, 0
    %v876 = vadd.f32 %v870, %v875
    %v877 = vadd.f32 %v871, %v875
    %v878 = vadd.f32 %v872, %v875
    %v879 = vadd.f32 %v873, %v875
    %v880 = vadd.f32 %v874, %v875
    %v881 = vmul.f32 %v876, %v98
    %v882 = vmul.f32 %v877, %v103
    %v883 = vmul.f32 %v878, %v108
    %v884 = vmul.f32 %v879, %v113
    %v885 = vmul.f32 %v880, %v118
    %v886 = vld [vmem:[#allocation7] sm:$0xff]
    %v887 = vld [vmem:[#allocation7 + $0x8] sm:$0xff]
    %v888 = vld [vmem:[#allocation7 + $0x10] sm:$0xff]
    %v889 = vld [vmem:[#allocation7 + $0x18] sm:$0xff]
    %v890 = vld [vmem:[#allocation7 + $0x20] sm:$0xff]
    %v891 = vld [vmem:[#allocation7 + $0x28] sm:$0xff]
    %v892 = vld [vmem:[#allocation7 + $0x30] sm:$0xff]
    %v893 = vld [vmem:[#allocation7 + $0x38] sm:$0xff]
    %v894 = vld [vmem:[#allocation7 + $0x40] sm:$0xff]
    %v895 = vld [vmem:[#allocation7 + $0x48] sm:$0xff]
    %v896 = vld [vmem:[#allocation7 + $0x50] sm:$0xff]
    %v897 = vld [vmem:[#allocation7 + $0x58] sm:$0xff]
    %v898 = vld [vmem:[#allocation7 + $0x60] sm:$0xff]
    %v899 = vld [vmem:[#allocation7 + $0x68] sm:$0xff]
    %v900 = vld [vmem:[#allocation7 + $0x70] sm:$0xff]
    %v901 = vld [vmem:[#allocation7 + $0x78] sm:$0xff]
    %v902 = vld [vmem:[%s4 + $0x8] sm:$0x1]
    %v903 = vperm.slane %v902, 0
    %904 = vmatpush.msra.mxu0 %v901
    %905 = vmatpush.msra.mxu0 %v900
    %906 = vmatpush.msra.mxu0 %v899
    %907 = vmatpush.msra.mxu0 %v898
    %908 = vmatpush.msra.mxu0 %v897
    %909 = vmatpush.msra.mxu0 %v896
    %910 = vmatpush.msra.mxu0 %v895
    %911 = vmatpush.msra.mxu0 %v894
    %912 = vmatpush.msra.mxu0 %v893
    %913 = vmatpush.msra.mxu0 %v892
    %914 = vmatpush.msra.mxu0 %v891
    %915 = vmatpush.msra.mxu0 %v890
    %916 = vmatpush.msra.mxu0 %v889
    %917 = vmatpush.msra.mxu0 %v888
    %918 = vmatpush.msra.mxu0 %v887
    %919 = vmatpush.msra.mxu0 %v886
    %920 = vmatmul.f32.gmra.mxu0 %v881
    %v921 = vpop.f32.mrf.mxu0
    %v922 = vadd.f32 %v903, %v921
    %923 = vmatmul.f32.gmra.mxu0 %v882
    %v924 = vpop.f32.mrf.mxu0
    %v925 = vadd.f32 %v903, %v924
    %926 = vmatmul.f32.gmra.mxu0 %v883
    %v927 = vpop.f32.mrf.mxu0
    %v928 = vadd.f32 %v903, %v927
    %929 = vmatmul.f32.gmra.mxu0 %v884
    %v930 = vpop.f32.mrf.mxu0
    %v931 = vadd.f32 %v903, %v930
    %932 = vmatmul.f32.gmra.mxu0 %v885
    %v933 = vpop.f32.mrf.mxu0
    %v934 = vadd.f32 %v903, %v933
    %935 = vdwg.mxu0
    %936 = vst [vmem:[%s8] sm:$0xff] %v922
    %937 = vst [vmem:[%s8 + $0x8] sm:$0xff] %v925
    %938 = vst [vmem:[%s8 + $0x10] sm:$0xff] %v928
    %939 = vst [vmem:[%s8 + $0x18] sm:$0xff] %v931
    %940 = vst [vmem:[%s8 + $0x20] sm:$0xf] %v934
    // Predicated region
    $region46: #{no_skip_conv_block.1} parent=1 // pred_check
      _
    $region47: #{no_skip_conv_block.1} parent=1 // pred_check_branch
      %942 = sbr.rel (0) target = $region49
    $region48: #{no_skip_conv_block.1} parent=1 // pred_region
      _
    $region49: #{no_skip_conv_block.1} parent=1 // pred_fallthru
      _
    // Predicated region
    $region50: #{no_skip_conv_block.1} parent=1 // pred_check
      _
    $region51: #{no_skip_conv_block.1} parent=1 // pred_check_branch
      %944 = sbr.rel (0) target = $region53
    $region52: #{no_skip_conv_block.1} parent=1 // pred_region
      _
    $region53: #{no_skip_conv_block.1} parent=1 // pred_fallthru
      _
    %945 = vsyncpa [#allocation4], 1
    %946 = vsyncpa [#allocation6], 1

</llo_original>
